<compile_context>
chip_gen: v5e
topology: v5e:2x2
jax: 0.10.0
libtpu: 0.0.40
codegen_flags: <defaults>
</compile_context>

<pallas_src>
import math
from functools import partial

import jax
import jax.numpy as jnp
import numpy as np
from jax.experimental import pallas as pl
from jax.experimental.pallas import tpu as pltpu

IN_DIM = 7
OUT_DIM = 24
NUM = 5                      # KANLayer default grid intervals
K = 3                        # KANLayer default spline order
N_BASIS = NUM + K            # 8 B-spline basis functions
N_GRID = NUM + 2 * K + 1     # 12 extended knots
N_FUSED = N_BASIS + 1        # 8 spline weights + 1 SiLU residual weight per in_dim
H = 2.0 / NUM                # uniform knot spacing
LANE_CHUNK = 256             # lanes per inner-loop chunk (keeps live set < ~56 vregs)


def _knots_np():
    # KANLayer extended uniform grid: linspace(-1, 1, num+1) extended by k knots/side.
    base = np.linspace(-1.0, 1.0, NUM + 1).astype(np.float32)
    h = (base[-1] - base[0]) / NUM
    left = base[0] - h * np.arange(K, 0, -1, dtype=np.float32)
    right = base[-1] + h * np.arange(1, K + 1, dtype=np.float32)
    return np.concatenate([left, base, right]).astype(np.float32)


_T = [float(v) for v in _knots_np()]
# Normalization dropped from the unnormalized uniform-grid recursion, folded into weights.
_UNNORM = 1.0 / (math.factorial(K) * (H ** K))


def _tab_encoder_kernel(x_ref, fw_ref, b_ref, out_ref):
    """x_ref:  (cpb, IN_DIM, LANE_CHUNK) f32, batch on lanes, chunked along axis 0.
    fw_ref: (IN_DIM, N_FUSED) fused weights.   b_ref: (1, 1) bias in SMEM.
    out_ref: (cpb, 1, LANE_CHUNK) lane-dense predictions."""
    fw = fw_ref[...]
    bias = b_ref[0, 0]
    cpb = x_ref.shape[0]

    @pl.loop(0, cpb)
    def _chunk(c):
        x = x_ref[c]                                            # (I, W) f32

        # Degree-0 basis via step functions: basis_j = 1[x>=T_j] - 1[x>=T_{j+1}].
        step = [(x >= _T[j]).astype(jnp.float32) for j in range(N_GRID)]
        basis = [step[j] - step[j + 1] for j in range(N_GRID - 1)]

        # d_j = x - T_j, shared by every recursion level.
        d = [x - _T[j] for j in range(N_GRID)]

        # Unnormalized uniform-grid Cox-de-Boor (denominators kk*h are j-independent;
        # the cumulative 1/(K!*h^K) is folded into the fused spline weights).
        for kk in range(1, K + 1):
            basis = [d[j] * basis[j] - d[j + kk + 1] * basis[j + 1]
                     for j in range(N_GRID - 1 - kk)]
        # basis: N_BASIS x (I, W)

        # Fused contraction: coef*scale_sp*mask, sum over out_dim and the tab_cls
        # weight all live in fw, so this is a 63-term MAC + SiLU residual branch.
        acc = basis[0] * fw[:, 0:1]
        for kb in range(1, N_BASIS):
            acc = acc + basis[kb] * fw[:, kb:kb + 1]
        acc = acc + (x * jax.nn.sigmoid(x)) * fw[:, N_BASIS:N_BASIS + 1]

        pred = jnp.sum(acc, axis=0, keepdims=True) + bias       # (1, W)
        out_ref[c] = pred.astype(out_ref.dtype)


def fuse_params(params):
    """Fold (coef, scale_base, scale_sp, mask, out_dim-sum, tab_cls weight) and the
    spline normalization into one (IN_DIM, N_FUSED) table.  Call once per param update
    (hoisted out of the per-forward path)."""
    _grid, coef, sb, ssp, mask, w, b = params
    hi = jax.lax.Precision.HIGHEST
    wo = w[0].astype(jnp.float32)                                       # (O,)
    w_spline = jnp.einsum('io,iok,o->ik', (mask * ssp).astype(jnp.float32),
                          coef.astype(jnp.float32), wo, precision=hi) * _UNNORM
    w_base = jnp.einsum('io,o->i', (mask * sb).astype(jnp.float32), wo, precision=hi)
    fused = jnp.concatenate([w_spline, w_base[:, None]], axis=1)        # (I, N_FUSED)
    return fused.astype(jnp.float32), jnp.asarray(b, jnp.float32).reshape(1, 1)


def _cdiv(a, b):
    return -(-a // b)


def _tile_plan(batch, max_batch_tile):
    assert max_batch_tile > 0 and max_batch_tile % LANE_CHUNK == 0
    n_chunks = max(_cdiv(batch, LANE_CHUNK), 1)
    max_cpb = max_batch_tile // LANE_CHUNK
    if n_chunks <= 1:
        cpb = 1
    else:
        # >= 2 grid blocks whenever there is >1 chunk of work, so the "parallel"
        # axis can be sharded across both TensorCores on 2-TC parts (v7x).
        cpb = min(_cdiv(n_chunks, 2), max_cpb)
    num_blocks = _cdiv(n_chunks, cpb)
    n_total = num_blocks * cpb
    return cpb, num_blocks, n_total, n_total * LANE_CHUNK


@partial(jax.jit, static_argnames=("max_batch_tile",))
def tab_encoder_forward(tab, fused_w, bias, *, max_batch_tile=8192):
    """tab: (B, IN_DIM).  fused_w, bias: from fuse_params.  Returns (B, 1)."""
    B, I = tab.shape
    assert I == IN_DIM
    cpb, num_blocks, n_total, b_pad = _tile_plan(B, max_batch_tile)

    x = tab.astype(jnp.float32)
    if b_pad != B:
        x = jnp.pad(x, ((0, b_pad - B), (0, 0)))                # ragged tail -> pad
    # Single layout pass: (b_pad, I) -> (n_chunks, I, LANE_CHUNK), batch on lanes.
    # TODO(synk): accept feature-major / pre-chunked input upstream to skip this extra
    # HBM pass for very large batches.
    x3 = x.reshape(n_total, LANE_CHUNK, IN_DIM).transpose(0, 2, 1)

    out = pl.pallas_call(
        _tab_encoder_kernel,
        out_shape=jax.ShapeDtypeStruct((n_total, 1, LANE_CHUNK), jnp.float32),
        grid=(num_blocks,),
        in_specs=[
            pl.BlockSpec((cpb, IN_DIM, LANE_CHUNK), lambda i: (i, 0, 0)),
            pl.BlockSpec((IN_DIM, N_FUSED), lambda i: (0, 0)),
            pl.BlockSpec(memory_space=pltpu.MemorySpace.SMEM),
        ],
        out_specs=pl.BlockSpec((cpb, 1, LANE_CHUNK), lambda i: (i, 0, 0)),
        compiler_params=pltpu.CompilerParams(
            dimension_semantics=("parallel",)),
    )(x3, fused_w, bias)

    return out.reshape(-1)[:B].reshape(B, 1)


def make_grid():
    return jnp.broadcast_to(jnp.asarray(_knots_np(), jnp.float32), (IN_DIM, N_GRID))


def make_params(key):
    k_coef, k_sb, k_ssp, k_w, k_b = jax.random.split(key, 5)
    grid_knots = make_grid()
    coef = 0.1 * jax.random.normal(k_coef, (IN_DIM, OUT_DIM, N_BASIS), jnp.float32)
    sb = (jax.random.normal(k_sb, (IN_DIM, OUT_DIM), jnp.float32)
          / jnp.sqrt(float(IN_DIM)))
    ssp = ((1.0 + 0.05 * jax.random.normal(k_ssp, (IN_DIM, OUT_DIM), jnp.float32))
           / jnp.sqrt(float(IN_DIM)))
    mask = jnp.ones((IN_DIM, OUT_DIM), jnp.float32)
    w = (jax.random.normal(k_w, (1, OUT_DIM), jnp.float32)
         / jnp.sqrt(float(OUT_DIM)))
    b = 0.01 * jax.random.normal(k_b, (1, 1), jnp.float32)
    return grid_knots, coef, sb, ssp, mask, w, b


def reference_forward(tab, params):
    """Pure-JAX reference reproducing KANLayer.forward + Linear(24, 1)."""
    grid_knots, coef, sb, ssp, mask, w, b = params
    hi = jax.lax.Precision.HIGHEST
    xe = tab[:, :, None]
    ge = grid_knots[None, :, :]
    basis = ((xe >= ge[:, :, :-1]) & (xe < ge[:, :, 1:])).astype(jnp.float32)
    for kk in range(1, K + 1):
        left = (xe - ge[:, :, :-(kk + 1)]) / (ge[:, :, kk:-1] - ge[:, :, :-(kk + 1)])
        right = (ge[:, :, kk + 1:] - xe) / (ge[:, :, kk + 1:] - ge[:, :, 1:-kk])
        basis = left * basis[:, :, :-1] + right * basis[:, :, 1:]
    spline = jnp.einsum('bik,iok->bio', basis, coef, precision=hi)
    base = tab * jax.nn.sigmoid(tab)
    y = mask[None] * (sb[None] * base[:, :, None] + ssp[None] * spline)
    q = jnp.sum(y, axis=1)
    return jnp.einsum('bo,po->bp', q, w, precision=hi) + b.reshape(1, 1)   # (B, 1)


if __name__ == "__main__":
    key = jax.random.PRNGKey(0)
    k_x, k_p = jax.random.split(key)
    params = make_params(k_p)
    fused_w, bias = fuse_params(params)            # hoisted out of the forward path

    # Small case: single block, single lane chunk (batch padded to 256 lanes).
    B = 8
    tab = jax.random.uniform(k_x, (B, IN_DIM), jnp.float32, minval=-1.0, maxval=1.0)
    out = jax.block_until_ready(tab_encoder_forward(tab, fused_w, bias))
    ref = reference_forward(tab, params)
    assert out.shape == (B, 1), out.shape
    assert jnp.allclose(out, ref, atol=2e-4, rtol=2e-4), (out, ref)

    # Multi-block path: 2 grid steps x 2 inner lane chunks with a ragged padded tail.
    B2 = 700
    tab2 = jax.random.uniform(jax.random.PRNGKey(1), (B2, IN_DIM), jnp.float32,
                              minval=-1.0, maxval=1.0)
    out2 = jax.block_until_ready(tab_encoder_forward(tab2, fused_w, bias))
    ref2 = reference_forward(tab2, params)
    assert out2.shape == (B2, 1), out2.shape
    assert jnp.allclose(out2, ref2, atol=2e-4, rtol=2e-4)

    print("KERNEL_OK")
</pallas_src>

<mosaic_0001>
module attributes {stable_mosaic.version = 11 : i64} {
  func.func @_tab_encoder_kernel(%arg0: i32, %arg1: memref<1x7x256xf32, #tpu.memory_space<vmem>>, %arg2: memref<7x9xf32, #tpu.memory_space<vmem>>, %arg3: memref<1x1xf32, #tpu.memory_space<smem>>, %arg4: memref<1x1x256xf32, #tpu.memory_space<vmem>>) attributes {dimension_semantics = [#tpu.dimension_semantics<parallel>], iteration_bounds = array<i64: 1>, scalar_prefetch = 0 : i64, scratch_operands = 0 : i64, tpu.core_type = #tpu.core_type<tc>, window_params = [{transform_indices = @transform_0, window_bounds = array<i64: 1, 7, 256>}, {pipeline_mode = #tpu.pipeline_mode<synchronous>, transform_indices = @transform_1, window_bounds = array<i64: 7, 9>}, {transform_indices = @transform_2, window_bounds = array<i64: 1, 1>}, {transform_indices = @transform_3, window_bounds = array<i64: 1, 1, 256>}]} {
    %c0 = arith.constant 0 : index
    %c0_0 = arith.constant 0 : index
    %0 = vector.load %arg2[%c0, %c0_0] : memref<7x9xf32, #tpu.memory_space<vmem>>, vector<7x9xf32>
    %c0_1 = arith.constant 0 : index
    %c0_2 = arith.constant 0 : index
    %1 = memref.load %arg3[%c0_1, %c0_2] : memref<1x1xf32, #tpu.memory_space<smem>>
    %c0_i32 = arith.constant 0 : i32
    %c1_i32 = arith.constant 1 : i32
    %2 = arith.muli %c0_i32, %c1_i32 : i32
    %c0_i32_3 = arith.constant 0 : i32
    %3 = arith.addi %c0_i32_3, %2 : i32
    %4 = arith.index_cast %3 : i32 to index
    %c0_4 = arith.constant 0 : index
    %c0_5 = arith.constant 0 : index
    %5 = vector.load %arg1[%4, %c0_4, %c0_5] : memref<1x7x256xf32, #tpu.memory_space<vmem>>, vector<1x7x256xf32>
    %6 = vector.shape_cast %5 : vector<1x7x256xf32> to vector<7x256xf32>
    %cst = arith.constant -2.200000e+00 : f32
    %7 = vector.broadcast %cst : f32 to vector<7x256xf32>
    %8 = arith.cmpf oge, %6, %7 : vector<7x256xf32>
    %9 = arith.extui %8 : vector<7x256xi1> to vector<7x256xi32>
    %10 = arith.sitofp %9 : vector<7x256xi32> to vector<7x256xf32>
    %cst_6 = arith.constant -1.800000e+00 : f32
    %11 = vector.broadcast %cst_6 : f32 to vector<7x256xf32>
    %12 = arith.cmpf oge, %6, %11 : vector<7x256xf32>
    %13 = arith.extui %12 : vector<7x256xi1> to vector<7x256xi32>
    %14 = arith.sitofp %13 : vector<7x256xi32> to vector<7x256xf32>
    %cst_7 = arith.constant -1.400000e+00 : f32
    %15 = vector.broadcast %cst_7 : f32 to vector<7x256xf32>
    %16 = arith.cmpf oge, %6, %15 : vector<7x256xf32>
    %17 = arith.extui %16 : vector<7x256xi1> to vector<7x256xi32>
    %18 = arith.sitofp %17 : vector<7x256xi32> to vector<7x256xf32>
    %cst_8 = arith.constant -1.000000e+00 : f32
    %19 = vector.broadcast %cst_8 : f32 to vector<7x256xf32>
    %20 = arith.cmpf oge, %6, %19 : vector<7x256xf32>
    %21 = arith.extui %20 : vector<7x256xi1> to vector<7x256xi32>
    %22 = arith.sitofp %21 : vector<7x256xi32> to vector<7x256xf32>
    %cst_9 = arith.constant -6.000000e-01 : f32
    %23 = vector.broadcast %cst_9 : f32 to vector<7x256xf32>
    %24 = arith.cmpf oge, %6, %23 : vector<7x256xf32>
    %25 = arith.extui %24 : vector<7x256xi1> to vector<7x256xi32>
    %26 = arith.sitofp %25 : vector<7x256xi32> to vector<7x256xf32>
    %cst_10 = arith.constant -2.000000e-01 : f32
    %27 = vector.broadcast %cst_10 : f32 to vector<7x256xf32>
    %28 = arith.cmpf oge, %6, %27 : vector<7x256xf32>
    %29 = arith.extui %28 : vector<7x256xi1> to vector<7x256xi32>
    %30 = arith.sitofp %29 : vector<7x256xi32> to vector<7x256xf32>
    %cst_11 = arith.constant 2.000000e-01 : f32
    %31 = vector.broadcast %cst_11 : f32 to vector<7x256xf32>
    %32 = arith.cmpf oge, %6, %31 : vector<7x256xf32>
    %33 = arith.extui %32 : vector<7x256xi1> to vector<7x256xi32>
    %34 = arith.sitofp %33 : vector<7x256xi32> to vector<7x256xf32>
    %cst_12 = arith.constant 6.000000e-01 : f32
    %35 = vector.broadcast %cst_12 : f32 to vector<7x256xf32>
    %36 = arith.cmpf oge, %6, %35 : vector<7x256xf32>
    %37 = arith.extui %36 : vector<7x256xi1> to vector<7x256xi32>
    %38 = arith.sitofp %37 : vector<7x256xi32> to vector<7x256xf32>
    %cst_13 = arith.constant 1.000000e+00 : f32
    %39 = vector.broadcast %cst_13 : f32 to vector<7x256xf32>
    %40 = arith.cmpf oge, %6, %39 : vector<7x256xf32>
    %41 = arith.extui %40 : vector<7x256xi1> to vector<7x256xi32>
    %42 = arith.sitofp %41 : vector<7x256xi32> to vector<7x256xf32>
    %cst_14 = arith.constant 1.400000e+00 : f32
    %43 = vector.broadcast %cst_14 : f32 to vector<7x256xf32>
    %44 = arith.cmpf oge, %6, %43 : vector<7x256xf32>
    %45 = arith.extui %44 : vector<7x256xi1> to vector<7x256xi32>
    %46 = arith.sitofp %45 : vector<7x256xi32> to vector<7x256xf32>
    %cst_15 = arith.constant 1.800000e+00 : f32
    %47 = vector.broadcast %cst_15 : f32 to vector<7x256xf32>
    %48 = arith.cmpf oge, %6, %47 : vector<7x256xf32>
    %49 = arith.extui %48 : vector<7x256xi1> to vector<7x256xi32>
    %50 = arith.sitofp %49 : vector<7x256xi32> to vector<7x256xf32>
    %cst_16 = arith.constant 2.200000e+00 : f32
    %51 = vector.broadcast %cst_16 : f32 to vector<7x256xf32>
    %52 = arith.cmpf oge, %6, %51 : vector<7x256xf32>
    %53 = arith.extui %52 : vector<7x256xi1> to vector<7x256xi32>
    %54 = arith.sitofp %53 : vector<7x256xi32> to vector<7x256xf32>
    %55 = arith.subf %10, %14 : vector<7x256xf32>
    %56 = arith.subf %14, %18 : vector<7x256xf32>
    %57 = arith.subf %18, %22 : vector<7x256xf32>
    %58 = arith.subf %22, %26 : vector<7x256xf32>
    %59 = arith.subf %26, %30 : vector<7x256xf32>
    %60 = arith.subf %30, %34 : vector<7x256xf32>
    %61 = arith.subf %34, %38 : vector<7x256xf32>
    %62 = arith.subf %38, %42 : vector<7x256xf32>
    %63 = arith.subf %42, %46 : vector<7x256xf32>
    %64 = arith.subf %46, %50 : vector<7x256xf32>
    %65 = arith.subf %50, %54 : vector<7x256xf32>
    %cst_17 = arith.constant -2.200000e+00 : f32
    %66 = vector.broadcast %cst_17 : f32 to vector<7x256xf32>
    %67 = arith.subf %6, %66 : vector<7x256xf32>
    %cst_18 = arith.constant -1.800000e+00 : f32
    %68 = vector.broadcast %cst_18 : f32 to vector<7x256xf32>
    %69 = arith.subf %6, %68 : vector<7x256xf32>
    %cst_19 = arith.constant -1.400000e+00 : f32
    %70 = vector.broadcast %cst_19 : f32 to vector<7x256xf32>
    %71 = arith.subf %6, %70 : vector<7x256xf32>
    %cst_20 = arith.constant -1.000000e+00 : f32
    %72 = vector.broadcast %cst_20 : f32 to vector<7x256xf32>
    %73 = arith.subf %6, %72 : vector<7x256xf32>
    %cst_21 = arith.constant -6.000000e-01 : f32
    %74 = vector.broadcast %cst_21 : f32 to vector<7x256xf32>
    %75 = arith.subf %6, %74 : vector<7x256xf32>
    %cst_22 = arith.constant -2.000000e-01 : f32
    %76 = vector.broadcast %cst_22 : f32 to vector<7x256xf32>
    %77 = arith.subf %6, %76 : vector<7x256xf32>
    %cst_23 = arith.constant 2.000000e-01 : f32
    %78 = vector.broadcast %cst_23 : f32 to vector<7x256xf32>
    %79 = arith.subf %6, %78 : vector<7x256xf32>
    %cst_24 = arith.constant 6.000000e-01 : f32
    %80 = vector.broadcast %cst_24 : f32 to vector<7x256xf32>
    %81 = arith.subf %6, %80 : vector<7x256xf32>
    %cst_25 = arith.constant 1.000000e+00 : f32
    %82 = vector.broadcast %cst_25 : f32 to vector<7x256xf32>
    %83 = arith.subf %6, %82 : vector<7x256xf32>
    %cst_26 = arith.constant 1.400000e+00 : f32
    %84 = vector.broadcast %cst_26 : f32 to vector<7x256xf32>
    %85 = arith.subf %6, %84 : vector<7x256xf32>
    %cst_27 = arith.constant 1.800000e+00 : f32
    %86 = vector.broadcast %cst_27 : f32 to vector<7x256xf32>
    %87 = arith.subf %6, %86 : vector<7x256xf32>
    %cst_28 = arith.constant 2.200000e+00 : f32
    %88 = vector.broadcast %cst_28 : f32 to vector<7x256xf32>
    %89 = arith.subf %6, %88 : vector<7x256xf32>
    %90 = arith.mulf %67, %55 : vector<7x256xf32>
    %91 = arith.mulf %71, %56 : vector<7x256xf32>
    %92 = arith.subf %90, %91 : vector<7x256xf32>
    %93 = arith.mulf %69, %56 : vector<7x256xf32>
    %94 = arith.mulf %73, %57 : vector<7x256xf32>
    %95 = arith.subf %93, %94 : vector<7x256xf32>
    %96 = arith.mulf %71, %57 : vector<7x256xf32>
    %97 = arith.mulf %75, %58 : vector<7x256xf32>
    %98 = arith.subf %96, %97 : vector<7x256xf32>
    %99 = arith.mulf %73, %58 : vector<7x256xf32>
    %100 = arith.mulf %77, %59 : vector<7x256xf32>
    %101 = arith.subf %99, %100 : vector<7x256xf32>
    %102 = arith.mulf %75, %59 : vector<7x256xf32>
    %103 = arith.mulf %79, %60 : vector<7x256xf32>
    %104 = arith.subf %102, %103 : vector<7x256xf32>
    %105 = arith.mulf %77, %60 : vector<7x256xf32>
    %106 = arith.mulf %81, %61 : vector<7x256xf32>
    %107 = arith.subf %105, %106 : vector<7x256xf32>
    %108 = arith.mulf %79, %61 : vector<7x256xf32>
    %109 = arith.mulf %83, %62 : vector<7x256xf32>
    %110 = arith.subf %108, %109 : vector<7x256xf32>
    %111 = arith.mulf %81, %62 : vector<7x256xf32>
    %112 = arith.mulf %85, %63 : vector<7x256xf32>
    %113 = arith.subf %111, %112 : vector<7x256xf32>
    %114 = arith.mulf %83, %63 : vector<7x256xf32>
    %115 = arith.mulf %87, %64 : vector<7x256xf32>
    %116 = arith.subf %114, %115 : vector<7x256xf32>
    %117 = arith.mulf %85, %64 : vector<7x256xf32>
    %118 = arith.mulf %89, %65 : vector<7x256xf32>
    %119 = arith.subf %117, %118 : vector<7x256xf32>
    %120 = arith.mulf %67, %92 : vector<7x256xf32>
    %121 = arith.mulf %73, %95 : vector<7x256xf32>
    %122 = arith.subf %120, %121 : vector<7x256xf32>
    %123 = arith.mulf %69, %95 : vector<7x256xf32>
    %124 = arith.mulf %75, %98 : vector<7x256xf32>
    %125 = arith.subf %123, %124 : vector<7x256xf32>
    %126 = arith.mulf %71, %98 : vector<7x256xf32>
    %127 = arith.mulf %77, %101 : vector<7x256xf32>
    %128 = arith.subf %126, %127 : vector<7x256xf32>
    %129 = arith.mulf %73, %101 : vector<7x256xf32>
    %130 = arith.mulf %79, %104 : vector<7x256xf32>
    %131 = arith.subf %129, %130 : vector<7x256xf32>
    %132 = arith.mulf %75, %104 : vector<7x256xf32>
    %133 = arith.mulf %81, %107 : vector<7x256xf32>
    %134 = arith.subf %132, %133 : vector<7x256xf32>
    %135 = arith.mulf %77, %107 : vector<7x256xf32>
    %136 = arith.mulf %83, %110 : vector<7x256xf32>
    %137 = arith.subf %135, %136 : vector<7x256xf32>
    %138 = arith.mulf %79, %110 : vector<7x256xf32>
    %139 = arith.mulf %85, %113 : vector<7x256xf32>
    %140 = arith.subf %138, %139 : vector<7x256xf32>
    %141 = arith.mulf %81, %113 : vector<7x256xf32>
    %142 = arith.mulf %87, %116 : vector<7x256xf32>
    %143 = arith.subf %141, %142 : vector<7x256xf32>
    %144 = arith.mulf %83, %116 : vector<7x256xf32>
    %145 = arith.mulf %89, %119 : vector<7x256xf32>
    %146 = arith.subf %144, %145 : vector<7x256xf32>
    %147 = arith.mulf %67, %122 : vector<7x256xf32>
    %148 = arith.mulf %75, %125 : vector<7x256xf32>
    %149 = arith.subf %147, %148 : vector<7x256xf32>
    %150 = arith.mulf %69, %125 : vector<7x256xf32>
    %151 = arith.mulf %77, %128 : vector<7x256xf32>
    %152 = arith.subf %150, %151 : vector<7x256xf32>
    %153 = arith.mulf %71, %128 : vector<7x256xf32>
    %154 = arith.mulf %79, %131 : vector<7x256xf32>
    %155 = arith.subf %153, %154 : vector<7x256xf32>
    %156 = arith.mulf %73, %131 : vector<7x256xf32>
    %157 = arith.mulf %81, %134 : vector<7x256xf32>
    %158 = arith.subf %156, %157 : vector<7x256xf32>
    %159 = arith.mulf %75, %134 : vector<7x256xf32>
    %160 = arith.mulf %83, %137 : vector<7x256xf32>
    %161 = arith.subf %159, %160 : vector<7x256xf32>
    %162 = arith.mulf %77, %137 : vector<7x256xf32>
    %163 = arith.mulf %85, %140 : vector<7x256xf32>
    %164 = arith.subf %162, %163 : vector<7x256xf32>
    %165 = arith.mulf %79, %140 : vector<7x256xf32>
    %166 = arith.mulf %87, %143 : vector<7x256xf32>
    %167 = arith.subf %165, %166 : vector<7x256xf32>
    %168 = arith.mulf %81, %143 : vector<7x256xf32>
    %169 = arith.mulf %89, %146 : vector<7x256xf32>
    %170 = arith.subf %168, %169 : vector<7x256xf32>
    %171 = vector.extract_strided_slice %0 {offsets = [0, 0], sizes = [7, 1], strides = [1, 1]} : vector<7x9xf32> to vector<7x1xf32>
    %172 = vector.broadcast %171 : vector<7x1xf32> to vector<7x256xf32>
    %173 = arith.mulf %149, %172 : vector<7x256xf32>
    %174 = vector.extract_strided_slice %0 {offsets = [0, 1], sizes = [7, 1], strides = [1, 1]} : vector<7x9xf32> to vector<7x1xf32>
    %175 = vector.broadcast %174 : vector<7x1xf32> to vector<7x256xf32>
    %176 = arith.mulf %152, %175 : vector<7x256xf32>
    %177 = arith.addf %173, %176 : vector<7x256xf32>
    %178 = vector.extract_strided_slice %0 {offsets = [0, 2], sizes = [7, 1], strides = [1, 1]} : vector<7x9xf32> to vector<7x1xf32>
    %179 = vector.broadcast %178 : vector<7x1xf32> to vector<7x256xf32>
    %180 = arith.mulf %155, %179 : vector<7x256xf32>
    %181 = arith.addf %177, %180 : vector<7x256xf32>
    %182 = vector.extract_strided_slice %0 {offsets = [0, 3], sizes = [7, 1], strides = [1, 1]} : vector<7x9xf32> to vector<7x1xf32>
    %183 = vector.broadcast %182 : vector<7x1xf32> to vector<7x256xf32>
    %184 = arith.mulf %158, %183 : vector<7x256xf32>
    %185 = arith.addf %181, %184 : vector<7x256xf32>
    %186 = vector.extract_strided_slice %0 {offsets = [0, 4], sizes = [7, 1], strides = [1, 1]} : vector<7x9xf32> to vector<7x1xf32>
    %187 = vector.broadcast %186 : vector<7x1xf32> to vector<7x256xf32>
    %188 = arith.mulf %161, %187 : vector<7x256xf32>
    %189 = arith.addf %185, %188 : vector<7x256xf32>
    %190 = vector.extract_strided_slice %0 {offsets = [0, 5], sizes = [7, 1], strides = [1, 1]} : vector<7x9xf32> to vector<7x1xf32>
    %191 = vector.broadcast %190 : vector<7x1xf32> to vector<7x256xf32>
    %192 = arith.mulf %164, %191 : vector<7x256xf32>
    %193 = arith.addf %189, %192 : vector<7x256xf32>
    %194 = vector.extract_strided_slice %0 {offsets = [0, 6], sizes = [7, 1], strides = [1, 1]} : vector<7x9xf32> to vector<7x1xf32>
    %195 = vector.broadcast %194 : vector<7x1xf32> to vector<7x256xf32>
    %196 = arith.mulf %167, %195 : vector<7x256xf32>
    %197 = arith.addf %193, %196 : vector<7x256xf32>
    %198 = vector.extract_strided_slice %0 {offsets = [0, 7], sizes = [7, 1], strides = [1, 1]} : vector<7x9xf32> to vector<7x1xf32>
    %199 = vector.broadcast %198 : vector<7x1xf32> to vector<7x256xf32>
    %200 = arith.mulf %170, %199 : vector<7x256xf32>
    %201 = arith.addf %197, %200 : vector<7x256xf32>
    %202 = arith.negf %6 : vector<7x256xf32>
    %203 = math.exp %202 : vector<7x256xf32>
    %cst_29 = arith.constant 1.000000e+00 : f32
    %204 = vector.broadcast %cst_29 : f32 to vector<7x256xf32>
    %205 = arith.addf %204, %203 : vector<7x256xf32>
    %206 = arith.divf %204, %205 : vector<7x256xf32>
    %207 = arith.mulf %6, %206 : vector<7x256xf32>
    %208 = vector.extract_strided_slice %0 {offsets = [0, 8], sizes = [7, 1], strides = [1, 1]} : vector<7x9xf32> to vector<7x1xf32>
    %209 = vector.broadcast %208 : vector<7x1xf32> to vector<7x256xf32>
    %210 = arith.mulf %207, %209 : vector<7x256xf32>
    %211 = arith.addf %201, %210 : vector<7x256xf32>
    %cst_30 = arith.constant dense<0.000000e+00> : vector<256xf32>
    %212 = vector.multi_reduction <add>, %211, %cst_30 [0] : vector<7x256xf32> to vector<256xf32>
    %213 = vector.shape_cast %212 : vector<256xf32> to vector<1x256xf32>
    %214 = vector.broadcast %1 : f32 to vector<1x256xf32>
    %215 = arith.addf %213, %214 : vector<1x256xf32>
    %216 = arith.index_cast %3 : i32 to index
    %c0_31 = arith.constant 0 : index
    %c0_32 = arith.constant 0 : index
    %217 = vector.load %arg4[%216, %c0_31, %c0_32] : memref<1x1x256xf32, #tpu.memory_space<vmem>>, vector<1x1x256xf32>
    %218 = vector.shape_cast %217 : vector<1x1x256xf32> to vector<1x256xf32>
    %219 = vector.shape_cast %215 : vector<1x256xf32> to vector<1x1x256xf32>
    tpu.vector_store %arg4[%216, %c0_31, %c0_32], %219 {strides = array<i32>} : memref<1x1x256xf32, #tpu.memory_space<vmem>>, vector<1x1x256xf32>,
    %c1_i32_33 = arith.constant 1 : i32
    return
  }
  func.func @transform_0(%arg0: i32) -> (i32, i32, i32) {
    %c0_i32 = arith.constant 0 : i32
    %c0_i32_0 = arith.constant 0 : i32
    %c0_i32_1 = arith.constant 0 : i32
    return %arg0, %c0_i32, %c0_i32_0 : i32, i32, i32
  }
  func.func @transform_1(%arg0: i32) -> (i32, i32) {
    %c0_i32 = arith.constant 0 : i32
    %c0_i32_0 = arith.constant 0 : i32
    %c0_i32_1 = arith.constant 0 : i32
    return %c0_i32, %c0_i32_0 : i32, i32
  }
  func.func @transform_2(%arg0: i32) -> (i32, i32) {
    %c0_i32 = arith.constant 0 : i32
    %c0_i32_0 = arith.constant 0 : i32
    %c0_i32_1 = arith.constant 0 : i32
    return %c0_i32, %c0_i32_0 : i32, i32
  }
  func.func @transform_3(%arg0: i32) -> (i32, i32, i32) {
    %c0_i32 = arith.constant 0 : i32
    %c0_i32_0 = arith.constant 0 : i32
    %c0_i32_1 = arith.constant 0 : i32
    return %arg0, %c0_i32, %c0_i32_0 : i32, i32, i32
  }
}

</mosaic_0001>

<llo_original>
// kernel: tab_encoder_forward.1
$region0: #{tab_encoder_forward.1}
  #allocation0 [shape = 'u32[]', space=smem, size = 0x4, offset = 0x4, fixed_abs, tag = 'smem constant byte address 0x4 - core index']
  #allocation1 [shape = 'u32[72,128]{1,0:T(1,128)}', space=vmem, size = 0x9000, scoped, tag = 'internal scratch']
  #allocation2 [shape = 'f32[1,1]{1,0:T(1,128)S(6)}', space=smem, size = 0x200, scoped, tag = 'scoped memory for tab_encoder_forward.1']
  %s0 = inlined_call_operand.vmem [shape: f32[1,7,256], index: 0, kind: input, shape index: {}]
  %s1 = inlined_call_operand.vmem [shape: f32[7,9], index: 1, kind: input, shape index: {}]
  %s2 = inlined_call_operand.<no memory space> [shape: f32[1,1], index: 2, kind: input, shape index: {}]
  %s3 = inlined_call_operand.vmem [shape: f32[1,1,256], index: 3, kind: output, shape index: {}]
  %s4 = sld [smem:[#allocation0]]
  $region22: #{tab_encoder_forward.1} parent=0
    _
  %s6 = ssub.s32 1, %s4
  %s7 = scalar_select 0, %s6, %s4
  %8 = sst [smem:[#allocation2]] %s2
  // Predicated region
  $region2: #{tab_encoder_forward.1} parent=0 // pred_check
    _
  $region3: #{tab_encoder_forward.1} parent=0 // pred_check_branch
    %10 = sbr.rel (0) target = $region5
  $region4: #{tab_encoder_forward.1} parent=0 // pred_region
    _
  $region5: #{tab_encoder_forward.1} parent=0 // pred_fallthru
    _
  // Predicated region
  $region6: #{tab_encoder_forward.1} parent=0 // pred_check
    _
  $region7: #{tab_encoder_forward.1} parent=0 // pred_check_branch
    %12 = sbr.rel (0) target = $region9
  $region8: #{tab_encoder_forward.1} parent=0 // pred_region
    _
  $region9: #{tab_encoder_forward.1} parent=0 // pred_fallthru
    _
  // Predicated region
  $region10: #{tab_encoder_forward.1} parent=0 // pred_check
    _
  $region11: #{tab_encoder_forward.1} parent=0 // pred_check_branch
    %14 = sbr.rel (0) target = $region13
  $region12: #{tab_encoder_forward.1} parent=0 // pred_region
    _
  $region13: #{tab_encoder_forward.1} parent=0 // pred_fallthru
    _
  %v15 = vld [vmem:[%s1] sm:$0x7f]
  %s16 = sld [smem:[#allocation2]]
  %v17 = vld [vmem:[%s0] sm:$0x7f]
  %v18 = vld [vmem:[%s0 + $0x8] sm:$0x7f]
  %vm19 = vcmp.ge.f32.partialorder %v17, -2.2
  %vm20 = vcmp.ge.f32.partialorder %v18, -2.2
  %v21 = vsel %vm19, 1, 0
  %v22 = vsel %vm20, 1, 0
  %v23 = vcvt.s32.f32 %v21
  %v24 = vcvt.s32.f32 %v22
  %vm25 = vcmp.ge.f32.partialorder %v17, -1.8
  %vm26 = vcmp.ge.f32.partialorder %v18, -1.8
  %v27 = vsel %vm25, 1, 0
  %v28 = vsel %vm26, 1, 0
  %v29 = vcvt.s32.f32 %v27
  %v30 = vcvt.s32.f32 %v28
  %vm31 = vcmp.ge.f32.partialorder %v17, -1.4
  %vm32 = vcmp.ge.f32.partialorder %v18, -1.4
  %v33 = vsel %vm31, 1, 0
  %v34 = vsel %vm32, 1, 0
  %v35 = vcvt.s32.f32 %v33
  %v36 = vcvt.s32.f32 %v34
  %vm37 = vcmp.ge.f32.partialorder %v17, -1.0
  %vm38 = vcmp.ge.f32.partialorder %v18, -1.0
  %v39 = vsel %vm37, 1, 0
  %v40 = vsel %vm38, 1, 0
  %v41 = vcvt.s32.f32 %v39
  %v42 = vcvt.s32.f32 %v40
  %vm43 = vcmp.ge.f32.partialorder %v17, -0.6
  %vm44 = vcmp.ge.f32.partialorder %v18, -0.6
  %v45 = vsel %vm43, 1, 0
  %v46 = vsel %vm44, 1, 0
  %v47 = vcvt.s32.f32 %v45
  %v48 = vcvt.s32.f32 %v46
  %vm49 = vcmp.ge.f32.partialorder %v17, -0.2
  %vm50 = vcmp.ge.f32.partialorder %v18, -0.2
  %v51 = vsel %vm49, 1, 0
  %v52 = vsel %vm50, 1, 0
  %v53 = vcvt.s32.f32 %v51
  %v54 = vcvt.s32.f32 %v52
  %vm55 = vcmp.ge.f32.partialorder %v17, 0.2
  %vm56 = vcmp.ge.f32.partialorder %v18, 0.2
  %v57 = vsel %vm55, 1, 0
  %v58 = vsel %vm56, 1, 0
  %v59 = vcvt.s32.f32 %v57
  %v60 = vcvt.s32.f32 %v58
  %vm61 = vcmp.ge.f32.partialorder %v17, 0.6
  %vm62 = vcmp.ge.f32.partialorder %v18, 0.6
  %v63 = vsel %vm61, 1, 0
  %v64 = vsel %vm62, 1, 0
  %v65 = vcvt.s32.f32 %v63
  %v66 = vcvt.s32.f32 %v64
  %vm67 = vcmp.ge.f32.partialorder %v17, 1.0
  %vm68 = vcmp.ge.f32.partialorder %v18, 1.0
  %v69 = vsel %vm67, 1, 0
  %v70 = vsel %vm68, 1, 0
  %v71 = vcvt.s32.f32 %v69
  %v72 = vcvt.s32.f32 %v70
  %vm73 = vcmp.ge.f32.partialorder %v17, 1.4
  %vm74 = vcmp.ge.f32.partialorder %v18, 1.4
  %v75 = vsel %vm73, 1, 0
  %v76 = vsel %vm74, 1, 0
  %v77 = vcvt.s32.f32 %v75
  %v78 = vcvt.s32.f32 %v76
  %vm79 = vcmp.ge.f32.partialorder %v17, 1.8
  %vm80 = vcmp.ge.f32.partialorder %v18, 1.8
  %v81 = vsel %vm79, 1, 0
  %v82 = vsel %vm80, 1, 0
  %v83 = vcvt.s32.f32 %v81
  %v84 = vcvt.s32.f32 %v82
  %vm85 = vcmp.ge.f32.partialorder %v17, 2.2
  %vm86 = vcmp.ge.f32.partialorder %v18, 2.2
  %v87 = vsel %vm85, 1, 0
  %v88 = vsel %vm86, 1, 0
  %v89 = vcvt.s32.f32 %v87
  %v90 = vcvt.s32.f32 %v88
  %v91 = vsub.f32 %v23, %v29
  %v92 = vsub.f32 %v24, %v30
  %v93 = vsub.f32 %v29, %v35
  %v94 = vsub.f32 %v30, %v36
  %v95 = vsub.f32 %v35, %v41
  %v96 = vsub.f32 %v36, %v42
  %v97 = vsub.f32 %v41, %v47
  %v98 = vsub.f32 %v42, %v48
  %v99 = vsub.f32 %v47, %v53
  %v100 = vsub.f32 %v48, %v54
  %v101 = vsub.f32 %v53, %v59
  %v102 = vsub.f32 %v54, %v60
  %v103 = vsub.f32 %v59, %v65
  %v104 = vsub.f32 %v60, %v66
  %v105 = vsub.f32 %v65, %v71
  %v106 = vsub.f32 %v66, %v72
  %v107 = vsub.f32 %v71, %v77
  %v108 = vsub.f32 %v72, %v78
  %v109 = vsub.f32 %v77, %v83
  %v110 = vsub.f32 %v78, %v84
  %v111 = vsub.f32 %v83, %v89
  %v112 = vsub.f32 %v84, %v90
  %v113 = vsub.f32 %v17, -2.2
  %v114 = vsub.f32 %v18, -2.2
  %v115 = vsub.f32 %v17, -1.8
  %v116 = vsub.f32 %v18, -1.8
  %v117 = vsub.f32 %v17, -1.4
  %v118 = vsub.f32 %v18, -1.4
  %v119 = vsub.f32 %v17, -1.0
  %v120 = vsub.f32 %v18, -1.0
  %v121 = vsub.f32 %v17, -0.6
  %v122 = vsub.f32 %v18, -0.6
  %v123 = vsub.f32 %v17, -0.2
  %v124 = vsub.f32 %v18, -0.2
  %v125 = vsub.f32 %v17, 0.2
  %v126 = vsub.f32 %v18, 0.2
  %v127 = vsub.f32 %v17, 0.6
  %v128 = vsub.f32 %v18, 0.6
  %v129 = vsub.f32 %v17, 1.0
  %v130 = vsub.f32 %v18, 1.0
  %v131 = vsub.f32 %v17, 1.4
  %v132 = vsub.f32 %v18, 1.4
  %v133 = vsub.f32 %v17, 1.8
  %v134 = vsub.f32 %v18, 1.8
  %v135 = vsub.f32 %v17, 2.2
  %v136 = vsub.f32 %v18, 2.2
  %v137 = vmul.f32 %v113, %v91
  %v138 = vmul.f32 %v114, %v92
  %v139 = vmul.f32 %v117, %v93
  %v140 = vmul.f32 %v118, %v94
  %v141 = vsub.f32 %v137, %v139
  %v142 = vsub.f32 %v138, %v140
  %v143 = vmul.f32 %v115, %v93
  %v144 = vmul.f32 %v116, %v94
  %v145 = vmul.f32 %v119, %v95
  %v146 = vmul.f32 %v120, %v96
  %v147 = vsub.f32 %v143, %v145
  %v148 = vsub.f32 %v144, %v146
  %v149 = vmul.f32 %v117, %v95
  %v150 = vmul.f32 %v118, %v96
  %v151 = vmul.f32 %v121, %v97
  %v152 = vmul.f32 %v122, %v98
  %v153 = vsub.f32 %v149, %v151
  %v154 = vsub.f32 %v150, %v152
  %v155 = vmul.f32 %v119, %v97
  %v156 = vmul.f32 %v120, %v98
  %v157 = vmul.f32 %v123, %v99
  %v158 = vmul.f32 %v124, %v100
  %v159 = vsub.f32 %v155, %v157
  %v160 = vsub.f32 %v156, %v158
  %v161 = vmul.f32 %v121, %v99
  %v162 = vmul.f32 %v122, %v100
  %v163 = vmul.f32 %v125, %v101
  %v164 = vmul.f32 %v126, %v102
  %v165 = vsub.f32 %v161, %v163
  %v166 = vsub.f32 %v162, %v164
  %v167 = vmul.f32 %v123, %v101
  %v168 = vmul.f32 %v124, %v102
  %v169 = vmul.f32 %v127, %v103
  %v170 = vmul.f32 %v128, %v104
  %v171 = vsub.f32 %v167, %v169
  %v172 = vsub.f32 %v168, %v170
  %v173 = vmul.f32 %v125, %v103
  %v174 = vmul.f32 %v126, %v104
  %v175 = vmul.f32 %v129, %v105
  %v176 = vmul.f32 %v130, %v106
  %v177 = vsub.f32 %v173, %v175
  %v178 = vsub.f32 %v174, %v176
  %v179 = vmul.f32 %v127, %v105
  %v180 = vmul.f32 %v128, %v106
  %v181 = vmul.f32 %v131, %v107
  %v182 = vmul.f32 %v132, %v108
  %v183 = vsub.f32 %v179, %v181
  %v184 = vsub.f32 %v180, %v182
  %v185 = vmul.f32 %v129, %v107
  %v186 = vmul.f32 %v130, %v108
  %v187 = vmul.f32 %v133, %v109
  %v188 = vmul.f32 %v134, %v110
  %v189 = vsub.f32 %v185, %v187
  %v190 = vsub.f32 %v186, %v188
  %v191 = vmul.f32 %v131, %v109
  %v192 = vmul.f32 %v132, %v110
  %v193 = vmul.f32 %v135, %v111
  %v194 = vmul.f32 %v136, %v112
  %v195 = vsub.f32 %v191, %v193
  %v196 = vsub.f32 %v192, %v194
  %v197 = vmul.f32 %v113, %v141
  %v198 = vmul.f32 %v114, %v142
  %v199 = vmul.f32 %v119, %v147
  %v200 = vmul.f32 %v120, %v148
  %v201 = vsub.f32 %v197, %v199
  %v202 = vsub.f32 %v198, %v200
  %v203 = vmul.f32 %v115, %v147
  %v204 = vmul.f32 %v116, %v148
  %v205 = vmul.f32 %v121, %v153
  %v206 = vmul.f32 %v122, %v154
  %v207 = vsub.f32 %v203, %v205
  %v208 = vsub.f32 %v204, %v206
  %v209 = vmul.f32 %v117, %v153
  %v210 = vmul.f32 %v118, %v154
  %v211 = vmul.f32 %v123, %v159
  %v212 = vmul.f32 %v124, %v160
  %v213 = vsub.f32 %v209, %v211
  %v214 = vsub.f32 %v210, %v212
  %v215 = vmul.f32 %v119, %v159
  %v216 = vmul.f32 %v120, %v160
  %v217 = vmul.f32 %v125, %v165
  %v218 = vmul.f32 %v126, %v166
  %v219 = vsub.f32 %v215, %v217
  %v220 = vsub.f32 %v216, %v218
  %v221 = vmul.f32 %v121, %v165
  %v222 = vmul.f32 %v122, %v166
  %v223 = vmul.f32 %v127, %v171
  %v224 = vmul.f32 %v128, %v172
  %v225 = vsub.f32 %v221, %v223
  %v226 = vsub.f32 %v222, %v224
  %v227 = vmul.f32 %v123, %v171
  %v228 = vmul.f32 %v124, %v172
  %v229 = vmul.f32 %v129, %v177
  %v230 = vmul.f32 %v130, %v178
  %v231 = vsub.f32 %v227, %v229
  %v232 = vsub.f32 %v228, %v230
  %v233 = vmul.f32 %v125, %v177
  %v234 = vmul.f32 %v126, %v178
  %v235 = vmul.f32 %v131, %v183
  %v236 = vmul.f32 %v132, %v184
  %v237 = vsub.f32 %v233, %v235
  %v238 = vsub.f32 %v234, %v236
  %v239 = vmul.f32 %v127, %v183
  %v240 = vmul.f32 %v128, %v184
  %v241 = vmul.f32 %v133, %v189
  %v242 = vmul.f32 %v134, %v190
  %v243 = vsub.f32 %v239, %v241
  %v244 = vsub.f32 %v240, %v242
  %v245 = vmul.f32 %v129, %v189
  %v246 = vmul.f32 %v130, %v190
  %v247 = vmul.f32 %v135, %v195
  %v248 = vmul.f32 %v136, %v196
  %v249 = vsub.f32 %v245, %v247
  %v250 = vsub.f32 %v246, %v248
  %v251 = vmul.f32 %v113, %v201
  %v252 = vmul.f32 %v114, %v202
  %v253 = vmul.f32 %v121, %v207
  %v254 = vmul.f32 %v122, %v208
  %v255 = vsub.f32 %v251, %v253
  %v256 = vsub.f32 %v252, %v254
  %v257 = vmul.f32 %v115, %v207
  %v258 = vmul.f32 %v116, %v208
  %v259 = vmul.f32 %v123, %v213
  %v260 = vmul.f32 %v124, %v214
  %v261 = vsub.f32 %v257, %v259
  %v262 = vsub.f32 %v258, %v260
  %v263 = vmul.f32 %v117, %v213
  %v264 = vmul.f32 %v118, %v214
  %v265 = vmul.f32 %v125, %v219
  %v266 = vmul.f32 %v126, %v220
  %v267 = vsub.f32 %v263, %v265
  %v268 = vsub.f32 %v264, %v266
  %v269 = vmul.f32 %v119, %v219
  %v270 = vmul.f32 %v120, %v220
  %v271 = vmul.f32 %v127, %v225
  %v272 = vmul.f32 %v128, %v226
  %v273 = vsub.f32 %v269, %v271
  %v274 = vsub.f32 %v270, %v272
  %v275 = vmul.f32 %v121, %v225
  %v276 = vmul.f32 %v122, %v226
  %v277 = vmul.f32 %v129, %v231
  %v278 = vmul.f32 %v130, %v232
  %v279 = vsub.f32 %v275, %v277
  %v280 = vsub.f32 %v276, %v278
  %v281 = vmul.f32 %v123, %v231
  %v282 = vmul.f32 %v124, %v232
  %v283 = vmul.f32 %v131, %v237
  %v284 = vmul.f32 %v132, %v238
  %v285 = vsub.f32 %v281, %v283
  %v286 = vsub.f32 %v282, %v284
  %v287 = vmul.f32 %v125, %v237
  %v288 = vmul.f32 %v126, %v238
  %v289 = vmul.f32 %v133, %v243
  %v290 = vmul.f32 %v134, %v244
  %v291 = vsub.f32 %v287, %v289
  %v292 = vsub.f32 %v288, %v290
  %v293 = vmul.f32 %v127, %v243
  %v294 = vmul.f32 %v128, %v244
  %v295 = vmul.f32 %v135, %v249
  %v296 = vmul.f32 %v136, %v250
  %v297 = vsub.f32 %v293, %v295
  %v298 = vsub.f32 %v294, %v296
  %300 = vset.pattern.permute.xlu0 0
  %301 = vperm.xlu0 %300, %v15
  %v302 = vpop.permute.xlu0 %301
  %v304 = vmul.f32 %v255, %v302
  %v305 = vmul.f32 %v256, %v302
  %306 = vset.pattern.permute.xlu0 1
  %307 = vperm.xlu0 %306, %v15
  %v308 = vpop.permute.xlu0 %307
  %v310 = vmul.f32 %v261, %v308
  %v311 = vmul.f32 %v262, %v308
  %v312 = vadd.f32 %v304, %v310
  %v313 = vadd.f32 %v305, %v311
  %314 = vset.pattern.permute.xlu0 2
  %315 = vperm.xlu0 %314, %v15
  %v316 = vpop.permute.xlu0 %315
  %v318 = vmul.f32 %v267, %v316
  %v319 = vmul.f32 %v268, %v316
  %v320 = vadd.f32 %v312, %v318
  %v321 = vadd.f32 %v313, %v319
  %322 = vset.pattern.permute.xlu0 3
  %323 = vperm.xlu0 %322, %v15
  %v324 = vpop.permute.xlu0 %323
  %v326 = vmul.f32 %v273, %v324
  %v327 = vmul.f32 %v274, %v324
  %v328 = vadd.f32 %v320, %v326
  %v329 = vadd.f32 %v321, %v327
  %330 = vset.pattern.permute.xlu0 4
  %331 = vperm.xlu0 %330, %v15
  %v332 = vpop.permute.xlu0 %331
  %v334 = vmul.f32 %v279, %v332
  %v335 = vmul.f32 %v280, %v332
  %v336 = vadd.f32 %v328, %v334
  %v337 = vadd.f32 %v329, %v335
  %338 = vset.pattern.permute.xlu0 5
  %339 = vperm.xlu0 %338, %v15
  %v340 = vpop.permute.xlu0 %339
  %v342 = vmul.f32 %v285, %v340
  %v343 = vmul.f32 %v286, %v340
  %v344 = vadd.f32 %v336, %v342
  %v345 = vadd.f32 %v337, %v343
  %346 = vset.pattern.permute.xlu0 6
  %347 = vperm.xlu0 %346, %v15
  %v348 = vpop.permute.xlu0 %347
  %v350 = vmul.f32 %v291, %v348
  %v351 = vmul.f32 %v292, %v348
  %v352 = vadd.f32 %v344, %v350
  %v353 = vadd.f32 %v345, %v351
  %354 = vset.pattern.permute.xlu0 7
  %355 = vperm.xlu0 %354, %v15
  %v356 = vpop.permute.xlu0 %355
  %v358 = vmul.f32 %v297, %v356
  %v359 = vmul.f32 %v298, %v356
  %v360 = vadd.f32 %v352, %v358
  %v361 = vadd.f32 %v353, %v359
  %v362 = vxor.u32 %v17, 2147483648
  %v363 = vxor.u32 %v18, 2147483648
  %v364 = vmul.f32 %v362, 1.442695
  %v365 = vpow.pop %v364
  %v366 = vmul.f32 %v363, 1.442695
  %v367 = vpow.pop %v366
  %v368 = vadd.f32 %v365, 1.0
  %v369 = vadd.f32 %v367, 1.0
  %v370 = vrcp.pop %v368
  %v371 = vmul.f32 %v368, %v370
  %v372 = vsub.f32 1.0, %v371
  %v373 = vmul.f32 %v370, %v372
  %v374 = vadd.f32 %v370, %v373
  %vm375 = vweird.f32 %v368
  %vm376 = vweird.f32 %v370
  %vm377 = vmor %vm375, %vm376
  %v378 = vsel %vm377, %v370, %v374
  %v379 = vand.u32 2147483647, %v368
  %vm380 = vcmp.eq.f32.partialorder %v379, 8.507059e+37
  %v381 = vand.u32 %v368, 2147483648
  %v382 = vor.u32 1.1754944e-38, %v381
  %v383 = vsel %vm380, %v382, %v378
  %v384 = vmul.f32 1.0, %v383
  %v385 = vrcp.pop %v369
  %v386 = vmul.f32 %v369, %v385
  %v387 = vsub.f32 1.0, %v386
  %v388 = vmul.f32 %v385, %v387
  %v389 = vadd.f32 %v385, %v388
  %vm390 = vweird.f32 %v369
  %vm391 = vweird.f32 %v385
  %vm392 = vmor %vm390, %vm391
  %v393 = vsel %vm392, %v385, %v389
  %v394 = vand.u32 2147483647, %v369
  %vm395 = vcmp.eq.f32.partialorder %v394, 8.507059e+37
  %v396 = vand.u32 %v369, 2147483648
  %v397 = vor.u32 1.1754944e-38, %v396
  %v398 = vsel %vm395, %v397, %v393
  %v399 = vmul.f32 1.0, %v398
  %v400 = vmul.f32 %v17, %v384
  %v401 = vmul.f32 %v18, %v399
  %402 = vset.pattern.permute.xlu0 8
  %403 = vperm.xlu0 %402, %v15
  %v404 = vpop.permute.xlu0 %403
  %v406 = vmul.f32 %v400, %v404
  %v407 = vmul.f32 %v401, %v404
  %v408 = vadd.f32 %v360, %v406
  %v409 = vadd.f32 %v361, %v407
  %vm410 = vcmask 1046528
  %v411 = vsel %vm410, %v408, 0.0
  %v412 = vrot.slane %v411, 4
  %v413 = vadd.f32 %v411, %v412
  %v414 = vrot.slane %v413, 2
  %v415 = vadd.f32 %v413, %v414
  %v416 = vrot.slane %v415, 1
  %v417 = vadd.f32 %v415, %v416
  %v418 = vsel %vm410, %v409, 0.0
  %v419 = vrot.slane %v418, 4
  %v420 = vadd.f32 %v418, %v419
  %v421 = vrot.slane %v420, 2
  %v422 = vadd.f32 %v420, %v421
  %v423 = vrot.slane %v422, 1
  %v424 = vadd.f32 %v422, %v423
  %v425 = vstv %s16
  %v426 = vadd.f32 %v417, %v425
  %v427 = vadd.f32 %v424, %v425
  %v430 = vrot.slane %v427, 7
  %vm431 = vcmask 1040384
  %v432 = vsel %vm431, %v426, %v430
  %v434 = vlaneseq
  %vm435 = vcmp.ge.s32.totalorder %v434, 0
  %vm436 = vcmp.lt.s32.totalorder %v434, 256
  %vm437 = vmand %vm435, %vm436
  %438 = vst.msk [vmem:[%s3] sm:$0x3] %vm437, %v432
  // Predicated region
  $region14: #{tab_encoder_forward.1} parent=0 // pred_check
    _
  $region15: #{tab_encoder_forward.1} parent=0 // pred_check_branch
    %440 = sbr.rel (0) target = $region17
  $region16: #{tab_encoder_forward.1} parent=0 // pred_region
    _
  $region17: #{tab_encoder_forward.1} parent=0 // pred_fallthru
    _
  // Predicated region
  $region18: #{tab_encoder_forward.1} parent=0 // pred_check
    _
  $region19: #{tab_encoder_forward.1} parent=0 // pred_check_branch
    %442 = sbr.rel (0) target = $region21
  $region20: #{tab_encoder_forward.1} parent=0 // pred_region
    _
  $region21: #{tab_encoder_forward.1} parent=0 // pred_fallthru
    _

</llo_original>
